<compile_context>
chip_gen: v6e
topology: v6e:2x2x1
jax: 0.10.0
libtpu: 0.0.40
codegen_flags: <defaults>
</compile_context>

<pallas_src>
import numpy as np
import jax
import jax.numpy as jnp
from jax import lax
from jax.experimental import pallas as pl
from jax.experimental.pallas import tpu as pltpu

RATIO = 2        # SpectralLoss(ratio=2): sensor 'S2-20', nbands=6
NBANDS = 6
KSIZE = 41       # gen_mtf default 41x41 filters


def gen_mtf_weights(ratio=RATIO, nbands=NBANDS, n=KSIZE):
    """Deterministic per-band MTF-matched Gaussian lowpass filters, (nbands, n, n)."""
    # TODO(synk): the real gen_mtf uses a Kaiser-windowed FIR design of the Gaussian
    # MTF; we synthesize the underlying normalized Gaussian deterministically
    # (same shapes/semantics).
    gnyq = np.asarray([0.365, 0.360, 0.350, 0.350, 0.365, 0.360], np.float64)[:nbands]
    fcut = 1.0 / ratio
    coords = np.arange(n, dtype=np.float64) - (n - 1) / 2.0
    yy, xx = np.meshgrid(coords, coords, indexing="ij")
    w = np.zeros((nbands, n, n), np.float32)
    for b in range(nbands):
        alpha = np.sqrt(((n - 1) * (fcut / 2.0)) ** 2 / (-2.0 * np.log(gnyq[b])))
        sigma = (n - 1) / (2.0 * np.pi * alpha)          # spatial-domain std
        g = np.exp(-(xx ** 2 + yy ** 2) / (2.0 * sigma ** 2))
        w[b] = (g / g.sum()).astype(np.float32)
    return w


def _build_separable_factors(weights, B, H, W, ratio):
    """Host-side: fold filter (rank-r SVD), AvgPool2d(ratio) and the [9:-9] crop into
    per-channel left/right matrices so that, per (batch, channel),
        pooled_crop = sum_r A_r @ xpad @ C_r.
    A_r is additionally made block-diagonal over the batch so all batches go
    through the two MXU dots at once.
    Returns A (C, R, B*crop_h, B*Hp) f32 and Cc (C, R, Wp, crop_w) f32."""
    w = np.asarray(weights, np.float64)
    C, K, _ = w.shape
    pad = K // 2
    Hp, Wp = H + 2 * pad, W + 2 * pad
    Hl, Wl = H // ratio, W // ratio
    crop_h, crop_w = Hl - 18, Wl - 18

    # AvgPool2d(ratio) as matrices, with the [9:-9] crop applied.
    plm = np.zeros((Hl, H), np.float64)
    for i in range(Hl):
        plm[i, ratio * i: ratio * i + ratio] = 1.0 / ratio
    prm = np.zeros((W, Wl), np.float64)
    for j in range(Wl):
        prm[ratio * j: ratio * j + ratio, j] = 1.0 / ratio
    plm_c = plm[9:-9, :]                 # (crop_h, H)
    prm_c = prm[:, 9:-9]                 # (W, crop_w)

    # Rank-r separable decomposition of each band's 2-D filter (rank-1 for the
    # synthesized Gaussian; general MTF filters get a truncated SVD).
    svds = [np.linalg.svd(w[c]) for c in range(C)]
    ranks = [int(np.sum(s > (s[0] * 1e-6))) if s[0] > 0 else 0 for _, s, _ in svds]
    R = max(1, max(ranks))

    A = np.zeros((C, R, B * crop_h, B * Hp), np.float32)
    Cc = np.zeros((C, R, Wp, crop_w), np.float32)
    for c in range(C):
        U, S, Vt = svds[c]
        for r in range(min(R, ranks[c])):
            vcol = S[r] * U[:, r]                    # vertical 1-D factor (K,)
            hrow = Vt[r, :]                          # horizontal 1-D factor (K,)
            Bh = np.zeros((H, Hp), np.float64)       # Bh[i, i+ky] = vcol[ky]
            for i in range(H):
                Bh[i, i:i + K] = vcol
            Bw = np.zeros((Wp, W), np.float64)       # Bw[j+kx, j] = hrow[kx]
            for j in range(W):
                Bw[j:j + K, j] = hrow
            a_cr = (plm_c @ Bh).astype(np.float32)   # (crop_h, Hp)
            c_cr = (Bw @ prm_c).astype(np.float32)   # (Wp, crop_w)
            for b in range(B):                       # block-diagonal over batch
                A[c, r, b * crop_h:(b + 1) * crop_h, b * Hp:(b + 1) * Hp] = a_cr
            Cc[c, r] = c_cr
    return A, Cc, R, crop_h, crop_w, Hp, Wp


def spectral_loss_pallas(outputs, labels, weights, ratio=RATIO):
    B, C, H, W = outputs.shape
    K = weights.shape[-1]
    pad = K // 2
    A_np, C_np, R, crop_h, crop_w, Hp, Wp = _build_separable_factors(
        weights, B, H, W, ratio)
    assert crop_h > 0 and crop_w > 0, "spatial size too small for the [9:-9] crop"

    # --- glue: replicate 'same' padding (padding_mode='replicate'), then lay the
    #     data out channel-major with the batch stacked along rows so every grid
    #     step (one channel) feeds B*Hp rows to the MXU in a single dot.
    xpad = jnp.pad(outputs, ((0, 0), (0, 0), (pad, pad), (pad, pad)), mode="edge")
    x_flat = jnp.transpose(xpad, (1, 0, 2, 3)).reshape(C, B * Hp, Wp)
    x_flat = x_flat.astype(jnp.bfloat16)                      # halve dominant DMA bytes

    lab_flat = jnp.transpose(labels[:, :, 9:-9, 9:-9], (1, 0, 2, 3))
    lab_flat = lab_flat.reshape(C, B * crop_h, crop_w).astype(jnp.float32)

    A = jnp.asarray(A_np, jnp.float32)                        # (C, R, B*crop_h, B*Hp)
    Cc = jnp.asarray(C_np, jnp.bfloat16)                      # (C, R, Wp, crop_w)

    def kernel(x_ref, a_ref, c_ref, lab_ref, out_ref):
        # x_ref:   (B*Hp, Wp)            bf16
        # a_ref:   (R, B*crop_h, B*Hp)   f32
        # c_ref:   (R, Wp, crop_w)       bf16
        # lab_ref: (B*crop_h, crop_w)    f32
        # out_ref: (1, 1, 1)             f32 per-channel partial L1 sum
        x = x_ref[...]
        pooled = jnp.zeros((B * crop_h, crop_w), jnp.float32)
        for r in range(R):                                     # static; R == 1 here
            t = jnp.dot(x, c_ref[r], preferred_element_type=jnp.float32)
            pooled = pooled + jnp.dot(a_ref[r], t,
                                      preferred_element_type=jnp.float32)
        absdiff = jnp.abs(pooled - lab_ref[...])
        out_ref[...] = jnp.sum(absdiff, axis=(0, 1), keepdims=True).reshape(1, 1, 1)

    partials = pl.pallas_call(
        kernel,
        out_shape=jax.ShapeDtypeStruct((C, 1, 1), jnp.float32),
        grid_spec=pltpu.PrefetchScalarGridSpec(
            num_scalar_prefetch=0,
            grid=(C,),
            in_specs=[
                pl.BlockSpec((pl.Squeezed(), B * Hp, Wp),
                             lambda c: (c, 0, 0)),
                pl.BlockSpec((pl.Squeezed(), R, B * crop_h, B * Hp),
                             lambda c: (c, 0, 0, 0)),
                pl.BlockSpec((pl.Squeezed(), R, Wp, crop_w),
                             lambda c: (c, 0, 0, 0)),
                pl.BlockSpec((pl.Squeezed(), B * crop_h, crop_w),
                             lambda c: (c, 0, 0)),
            ],
            out_specs=pl.BlockSpec((1, 1, 1), lambda c: (c, 0, 0)),
        ),
        # Independent per-channel output blocks -> safe to shard across TCs (v7x).
        compiler_params=pltpu.CompilerParams(
            dimension_semantics=("parallel",)),
        # NOTE: at production image sizes, tile W and set vmem_limit_bytes here.
    )(x_flat, A, Cc, lab_flat)

    # L1 'mean' finalization in the wrapper (lane-independent partials per channel).
    return jnp.sum(partials) / np.float32(B * C * crop_h * crop_w)


def spectral_loss_ref(outputs, labels, weights, ratio=RATIO):
    """Pure-JAX reference mirroring the PyTorch module (full 2-D filter, f32)."""
    K = weights.shape[-1]
    pad = K // 2
    xpad = jnp.pad(outputs, ((0, 0), (0, 0), (pad, pad), (pad, pad)), mode="edge")
    conv = lax.conv_general_dilated(
        xpad, weights[:, None, :, :], window_strides=(1, 1), padding="VALID",
        dimension_numbers=("NCHW", "OIHW", "NCHW"),
        feature_group_count=weights.shape[0])
    B, C, H, W = conv.shape
    pooled = conv.reshape(B, C, H // ratio, ratio, W // ratio, ratio).mean(axis=(3, 5))
    return jnp.mean(jnp.abs(pooled[:, :, 9:-9, 9:-9] - labels[:, :, 9:-9, 9:-9]))


if __name__ == "__main__":
    key = jax.random.PRNGKey(0)
    k1, k2 = jax.random.split(key)
    B, C, H, W = 2, NBANDS, 48, 48
    outputs = jax.random.normal(k1, (B, C, H, W), jnp.float32)
    labels = jax.random.normal(k2, (B, C, H // RATIO, W // RATIO), jnp.float32)
    weights = jnp.asarray(gen_mtf_weights())

    loss = jax.block_until_ready(spectral_loss_pallas(outputs, labels, weights))
    ref = jax.block_until_ready(spectral_loss_ref(outputs, labels, weights))

    assert jnp.isfinite(loss), "non-finite loss"
    assert abs(float(loss) - float(ref)) <= 2e-2 * max(1.0, abs(float(ref))), (
        float(loss), float(ref))
    print("KERNEL_OK")
</pallas_src>

<mosaic_0001>
module attributes {stable_mosaic.version = 11 : i64} {
  func.func @kernel(%arg0: i32, %arg1: memref<1x176x88xbf16, #tpu.memory_space<vmem>>, %arg2: memref<1x1x12x176xf32, #tpu.memory_space<vmem>>, %arg3: memref<1x1x88x6xbf16, #tpu.memory_space<vmem>>, %arg4: memref<1x12x6xf32, #tpu.memory_space<vmem>>, %arg5: memref<1x1x1xf32, #tpu.memory_space<vmem>>) attributes {dimension_semantics = [#tpu.dimension_semantics<parallel>], iteration_bounds = array<i64: 6>, scalar_prefetch = 0 : i64, scratch_operands = 0 : i64, tpu.core_type = #tpu.core_type<tc>, window_params = [{transform_indices = @transform_0, window_bounds = array<i64: 1, 176, 88>}, {transform_indices = @transform_1, window_bounds = array<i64: 1, 1, 12, 176>}, {transform_indices = @transform_2, window_bounds = array<i64: 1, 1, 88, 6>}, {transform_indices = @transform_3, window_bounds = array<i64: 1, 12, 6>}, {transform_indices = @transform_4, window_bounds = array<i64: 1, 1, 1>}]} {
    %c0 = arith.constant 0 : index
    %c0_0 = arith.constant 0 : index
    %c0_1 = arith.constant 0 : index
    %0 = vector.load %arg1[%c0, %c0_0, %c0_1] : memref<1x176x88xbf16, #tpu.memory_space<vmem>>, vector<1x176x88xbf16>
    %1 = vector.shape_cast %0 : vector<1x176x88xbf16> to vector<176x88xbf16>
    %cst = arith.constant 0.000000e+00 : f32
    %2 = vector.broadcast %cst : f32 to vector<12x6xf32>
    %c0_2 = arith.constant 0 : index
    %c0_3 = arith.constant 0 : index
    %c0_4 = arith.constant 0 : index
    %c0_5 = arith.constant 0 : index
    %3 = vector.load %arg3[%c0_2, %c0_3, %c0_4, %c0_5] : memref<1x1x88x6xbf16, #tpu.memory_space<vmem>>, vector<1x1x88x6xbf16>
    %4 = vector.shape_cast %3 : vector<1x1x88x6xbf16> to vector<88x6xbf16>
    %cst_6 = arith.constant dense<0.000000e+00> : vector<176x6xf32>
    %5 = tpu.matmul %1, %4, %cst_6 {dimension_numbers = #tpu.dot_dimension_numbers<[1], [0], [0], [1], [0, 0, 1, 1], [], []>} : vector<176x88xbf16>, vector<88x6xbf16>, vector<176x6xf32> -> vector<176x6xf32>
    %c0_7 = arith.constant 0 : index
    %c0_8 = arith.constant 0 : index
    %c0_9 = arith.constant 0 : index
    %c0_10 = arith.constant 0 : index
    %6 = vector.load %arg2[%c0_7, %c0_8, %c0_9, %c0_10] : memref<1x1x12x176xf32, #tpu.memory_space<vmem>>, vector<1x1x12x176xf32>
    %7 = vector.shape_cast %6 : vector<1x1x12x176xf32> to vector<12x176xf32>
    %cst_11 = arith.constant dense<0.000000e+00> : vector<12x6xf32>
    %8 = tpu.matmul %7, %5, %cst_11 {dimension_numbers = #tpu.dot_dimension_numbers<[1], [0], [0], [1], [0, 0, 1, 1], [], []>} : vector<12x176xf32>, vector<176x6xf32>, vector<12x6xf32> -> vector<12x6xf32>
    %9 = arith.addf %2, %8 : vector<12x6xf32>
    %c0_12 = arith.constant 0 : index
    %c0_13 = arith.constant 0 : index
    %c0_14 = arith.constant 0 : index
    %10 = vector.load %arg4[%c0_12, %c0_13, %c0_14] : memref<1x12x6xf32, #tpu.memory_space<vmem>>, vector<1x12x6xf32>
    %11 = vector.shape_cast %10 : vector<1x12x6xf32> to vector<12x6xf32>
    %12 = arith.subf %9, %11 : vector<12x6xf32>
    %13 = math.absf %12 : vector<12x6xf32>
    %14 = vector.shape_cast %13 : vector<12x6xf32> to vector<1x12x6xf32>
    %cst_15 = arith.constant dense<0.000000e+00> : vector<1xf32>
    %15 = vector.multi_reduction <add>, %14, %cst_15 [1, 2] : vector<1x12x6xf32> to vector<1xf32>
    %16 = vector.shape_cast %15 : vector<1xf32> to vector<1x1x1xf32>
    %17 = vector.extract %16[0, 0, 0] : f32 from vector<1x1x1xf32>
    %18 = vector.broadcast %17 : f32 to vector<1x1xf32>
    %19 = vector.shape_cast %18 : vector<1x1xf32> to vector<1x1x1xf32>
    %c0_16 = arith.constant 0 : index
    %c0_17 = arith.constant 0 : index
    %c0_18 = arith.constant 0 : index
    %20 = vector.load %arg5[%c0_16, %c0_17, %c0_18] : memref<1x1x1xf32, #tpu.memory_space<vmem>>, vector<1x1x1xf32>
    tpu.vector_store %arg5[%c0_16, %c0_17, %c0_18], %19 {strides = array<i32>} : memref<1x1x1xf32, #tpu.memory_space<vmem>>, vector<1x1x1xf32>,
    return
  }
  func.func @transform_0(%arg0: i32) -> (i32, i32, i32) {
    %c0_i32 = arith.constant 0 : i32
    %c0_i32_0 = arith.constant 0 : i32
    %c0_i32_1 = arith.constant 0 : i32
    return %arg0, %c0_i32, %c0_i32_0 : i32, i32, i32
  }
  func.func @transform_1(%arg0: i32) -> (i32, i32, i32, i32) {
    %c0_i32 = arith.constant 0 : i32
    %c0_i32_0 = arith.constant 0 : i32
    %c0_i32_1 = arith.constant 0 : i32
    %c0_i32_2 = arith.constant 0 : i32
    return %arg0, %c0_i32, %c0_i32_0, %c0_i32_1 : i32, i32, i32, i32
  }
  func.func @transform_2(%arg0: i32) -> (i32, i32, i32, i32) {
    %c0_i32 = arith.constant 0 : i32
    %c0_i32_0 = arith.constant 0 : i32
    %c0_i32_1 = arith.constant 0 : i32
    %c0_i32_2 = arith.constant 0 : i32
    return %arg0, %c0_i32, %c0_i32_0, %c0_i32_1 : i32, i32, i32, i32
  }
  func.func @transform_3(%arg0: i32) -> (i32, i32, i32) {
    %c0_i32 = arith.constant 0 : i32
    %c0_i32_0 = arith.constant 0 : i32
    %c0_i32_1 = arith.constant 0 : i32
    return %arg0, %c0_i32, %c0_i32_0 : i32, i32, i32
  }
  func.func @transform_4(%arg0: i32) -> (i32, i32, i32) {
    %c0_i32 = arith.constant 0 : i32
    %c0_i32_0 = arith.constant 0 : i32
    %c0_i32_1 = arith.constant 0 : i32
    return %arg0, %c0_i32, %c0_i32_0 : i32, i32, i32
  }
}

</mosaic_0001>

<llo_original>
// kernel: tpu_custom_call.1
$region0: #{tpu_custom_call.1}
  #allocation0 [shape = 'u32[]', space=smem, size = 0x4, offset = 0x4, fixed_abs, tag = 'smem constant byte address 0x4 - core index']
  #allocation1 [shape = 'u32[144,128]{1,0:T(1,128)}', space=vmem, size = 0x12000, scoped, tag = 'internal scratch']
  %s0 = inlined_call_operand.vmem [shape: bf16[6,176,88], index: 0, kind: input, shape index: {}]
  %s1 = inlined_call_operand.vmem [shape: f32[6,1,12,176], index: 1, kind: input, shape index: {}]
  %s2 = inlined_call_operand.vmem [shape: bf16[6,1,88,6], index: 2, kind: input, shape index: {}]
  %s3 = inlined_call_operand.vmem [shape: f32[6,12,6], index: 3, kind: input, shape index: {}]
  %s4 = inlined_call_operand.vmem [shape: f32[6,1,1], index: 4, kind: output, shape index: {}]
  %s5 = sld [smem:[#allocation0]]
  $region49: #{tpu_custom_call.1} parent=0
    _
  %s7 = ssub.s32 1, %s5
  %s8 = scalar_select 0, %s7, %s5
  loop: start=0, step=1, limit=8
  $region2: #{tpu_custom_call.1} parent=0 // loop_pre_header
    _
  $region3: #{tpu_custom_call.1} parent=0 // loop_header
    %s10 = sphi 0, %s14
    %p11 = scmp.ge.s32.totalorder %s10, 8
    %s20 = sphi 0, %s22
    %s23 = sphi 0, %s20
    %s24 = sphi 0, %s23
    %s40 = sphi 0, %s24
    %s46 = sphi 0, %s48
    %s49 = sphi 0, %s46
    %s50 = sphi 0, %s49
    %s66 = sphi 0, %s50
    %s72 = sphi 0, %s74
    %s75 = sphi 0, %s72
    %s76 = sphi 0, %s75
    %s92 = sphi 0, %s76
    %s98 = sphi 0, %s100
    %s101 = sphi 0, %s98
    %s102 = sphi 0, %s101
    %s118 = sphi 0, %s102
    %s124 = sphi 0, %s126
    %s127 = sphi 0, %s124
    %s128 = sphi 0, %s127
    %s144 = sphi 0, %s128
  $region4: #{tpu_custom_call.1} parent=0 // loop_header_branch
    %13 = sbr.rel (%p11) target = $region8
  $region5: #{tpu_custom_call.1} parent=0 // loop_body
    %s15 = ssub.s32 %s10, 1
    %s16 = ssub.s32 %s10, 2
    %s17 = sadd.s32 %s10, 1
    %s18 = ssub.s32 %s10, %s17
    %p19 = scmp.eq.s32.totalorder %s18, 0
    %s21 = sadd.s32 %s20, 1
    %s22 = scalar_select %p19, %s20, %s21
    %p25 = pneg %p19
    %p26 = scmp.eq.s32.totalorder %s10, 5
    %p27 = por %p25, %p26
    %p28 = scmp.ne.s32.totalorder %s20, %s23
    %p29 = scmp.eq.s32.totalorder %s10, 0
    %p30 = por %p28, %p29
    %p31 = scmp.ne.s32.totalorder %s20, %s23
    %p32 = scmp.eq.s32.totalorder %s15, 5
    %p33 = por %p31, %p32
    %p34 = scmp.ne.s32.totalorder %s23, %s24
    %p35 = scmp.eq.s32.totalorder %s15, 0
    %p36 = por %p34, %p35
    %p37 = scmp.ne.s32.totalorder %s23, %s24
    %p38 = scmp.eq.s32.totalorder %s16, 5
    %p39 = por %p37, %p38
    %p41 = scmp.ne.s32.totalorder %s24, %s40
    %p42 = scmp.eq.s32.totalorder %s16, 0
    %p43 = por %p41, %p42
    %s44 = ssub.s32 %s10, %s17
    %p45 = scmp.eq.s32.totalorder %s44, 0
    %s47 = sadd.s32 %s46, 1
    %s48 = scalar_select %p45, %s46, %s47
    %p51 = pneg %p45
    %p52 = scmp.eq.s32.totalorder %s10, 5
    %p53 = por %p51, %p52
    %p54 = scmp.ne.s32.totalorder %s46, %s49
    %p55 = scmp.eq.s32.totalorder %s10, 0
    %p56 = por %p54, %p55
    %p57 = scmp.ne.s32.totalorder %s46, %s49
    %p58 = scmp.eq.s32.totalorder %s15, 5
    %p59 = por %p57, %p58
    %p60 = scmp.ne.s32.totalorder %s49, %s50
    %p61 = scmp.eq.s32.totalorder %s15, 0
    %p62 = por %p60, %p61
    %p63 = scmp.ne.s32.totalorder %s49, %s50
    %p64 = scmp.eq.s32.totalorder %s16, 5
    %p65 = por %p63, %p64
    %p67 = scmp.ne.s32.totalorder %s50, %s66
    %p68 = scmp.eq.s32.totalorder %s16, 0
    %p69 = por %p67, %p68
    %s70 = ssub.s32 %s10, %s17
    %p71 = scmp.eq.s32.totalorder %s70, 0
    %s73 = sadd.s32 %s72, 1
    %s74 = scalar_select %p71, %s72, %s73
    %p77 = pneg %p71
    %p78 = scmp.eq.s32.totalorder %s10, 5
    %p79 = por %p77, %p78
    %p80 = scmp.ne.s32.totalorder %s72, %s75
    %p81 = scmp.eq.s32.totalorder %s10, 0
    %p82 = por %p80, %p81
    %p83 = scmp.ne.s32.totalorder %s72, %s75
    %p84 = scmp.eq.s32.totalorder %s15, 5
    %p85 = por %p83, %p84
    %p86 = scmp.ne.s32.totalorder %s75, %s76
    %p87 = scmp.eq.s32.totalorder %s15, 0
    %p88 = por %p86, %p87
    %p89 = scmp.ne.s32.totalorder %s75, %s76
    %p90 = scmp.eq.s32.totalorder %s16, 5
    %p91 = por %p89, %p90
    %p93 = scmp.ne.s32.totalorder %s76, %s92
    %p94 = scmp.eq.s32.totalorder %s16, 0
    %p95 = por %p93, %p94
    %s96 = ssub.s32 %s10, %s17
    %p97 = scmp.eq.s32.totalorder %s96, 0
    %s99 = sadd.s32 %s98, 1
    %s100 = scalar_select %p97, %s98, %s99
    %p103 = pneg %p97
    %p104 = scmp.eq.s32.totalorder %s10, 5
    %p105 = por %p103, %p104
    %p106 = scmp.ne.s32.totalorder %s98, %s101
    %p107 = scmp.eq.s32.totalorder %s10, 0
    %p108 = por %p106, %p107
    %p109 = scmp.ne.s32.totalorder %s98, %s101
    %p110 = scmp.eq.s32.totalorder %s15, 5
    %p111 = por %p109, %p110
    %p112 = scmp.ne.s32.totalorder %s101, %s102
    %p113 = scmp.eq.s32.totalorder %s15, 0
    %p114 = por %p112, %p113
    %p115 = scmp.ne.s32.totalorder %s101, %s102
    %p116 = scmp.eq.s32.totalorder %s16, 5
    %p117 = por %p115, %p116
    %p119 = scmp.ne.s32.totalorder %s102, %s118
    %p120 = scmp.eq.s32.totalorder %s16, 0
    %p121 = por %p119, %p120
    %s122 = ssub.s32 %s10, %s17
    %p123 = scmp.eq.s32.totalorder %s122, 0
    %s125 = sadd.s32 %s124, 1
    %s126 = scalar_select %p123, %s124, %s125
    %p129 = pneg %p123
    %p130 = scmp.eq.s32.totalorder %s10, 5
    %p131 = por %p129, %p130
    %p132 = scmp.ne.s32.totalorder %s124, %s127
    %p133 = scmp.eq.s32.totalorder %s10, 0
    %p134 = por %p132, %p133
    %p135 = scmp.ne.s32.totalorder %s124, %s127
    %p136 = scmp.eq.s32.totalorder %s15, 5
    %p137 = por %p135, %p136
    %p138 = scmp.ne.s32.totalorder %s127, %s128
    %p139 = scmp.eq.s32.totalorder %s15, 0
    %p140 = por %p138, %p139
    %p141 = scmp.ne.s32.totalorder %s127, %s128
    %p142 = scmp.eq.s32.totalorder %s16, 5
    %p143 = por %p141, %p142
    %p145 = scmp.ne.s32.totalorder %s128, %s144
    %p146 = scmp.eq.s32.totalorder %s16, 0
    %p147 = por %p145, %p146
    %p148 = scmp.le.s32.totalorder 1, %s10
    %p149 = scmp.lt.s32.totalorder %s10, 7
    %p150 = pnand %p148, %p149
    %p151 = pneg %p150
    // Predicated region
    $region9: #{tpu_custom_call.1} parent=5 // pred_check
      _
    $region10: #{tpu_custom_call.1} parent=5 // pred_check_branch
      %153 = sbr.rel (%p150) target = $region12
    $region11: #{tpu_custom_call.1} parent=5 // pred_region
      %s154 = ssub.s32 %s10, 1
    $region12: #{tpu_custom_call.1} parent=5 // pred_fallthru
      _
    %p155 = scmp.lt.s32.totalorder %s10, 6
    // Predicated region
    $region13: #{tpu_custom_call.1} parent=5 // pred_check
      %p156 = pneg %p155
    $region14: #{tpu_custom_call.1} parent=5 // pred_check_branch
      %158 = sbr.rel (%p156) target = $region16
    $region15: #{tpu_custom_call.1} parent=5 // pred_region
      // Predicated region
      $region17: #{tpu_custom_call.1} parent=15 // pred_check
        %p159 = pneg %p30
      $region18: #{tpu_custom_call.1} parent=15 // pred_check_branch
        %161 = sbr.rel (%p159) target = $region20
      $region19: #{tpu_custom_call.1} parent=15 // pred_region
        %p162 = scmp.lt.s32.totalorder %s10, 5
        %s163 = scalar_select %p162, %s10, 5
        %s164 = smul.addr %s163, 22
        %s165 = smul.addr %s164, 4
        %s166 = scalar_lea.vmem %s0, %s165
      $region20: #{tpu_custom_call.1} parent=15 // pred_fallthru
        _
      // Predicated region
      $region21: #{tpu_custom_call.1} parent=15 // pred_check
        %p167 = pneg %p56
      $region22: #{tpu_custom_call.1} parent=15 // pred_check_branch
        %169 = sbr.rel (%p167) target = $region24
      $region23: #{tpu_custom_call.1} parent=15 // pred_region
        %p170 = scmp.lt.s32.totalorder %s10, 5
        %s171 = scalar_select %p170, %s10, 5
        %s172 = smul.addr %s171, 4
        %s173 = smul.addr %s172, 8
        %s174 = scalar_lea.vmem %s1, %s173
      $region24: #{tpu_custom_call.1} parent=15 // pred_fallthru
        _
      // Predicated region
      $region25: #{tpu_custom_call.1} parent=15 // pred_check
        %p175 = pneg %p82
      $region26: #{tpu_custom_call.1} parent=15 // pred_check_branch
        %177 = sbr.rel (%p175) target = $region28
      $region27: #{tpu_custom_call.1} parent=15 // pred_region
        %p178 = scmp.lt.s32.totalorder %s10, 5
        %s179 = scalar_select %p178, %s10, 5
        %s180 = smul.addr %s179, 11
        %s181 = smul.addr %s180, 4
        %s182 = scalar_lea.vmem %s2, %s181
      $region28: #{tpu_custom_call.1} parent=15 // pred_fallthru
        _
      // Predicated region
      $region29: #{tpu_custom_call.1} parent=15 // pred_check
        %p183 = pneg %p108
      $region30: #{tpu_custom_call.1} parent=15 // pred_check_branch
        %185 = sbr.rel (%p183) target = $region32
      $region31: #{tpu_custom_call.1} parent=15 // pred_region
        %p186 = scmp.lt.s32.totalorder %s10, 5
        %s187 = scalar_select %p186, %s10, 5
        %s188 = smul.addr %s187, 2
        %s189 = smul.addr %s188, 8
        %s190 = scalar_lea.vmem %s3, %s189
      $region32: #{tpu_custom_call.1} parent=15 // pred_fallthru
        _
    $region16: #{tpu_custom_call.1} parent=5 // pred_fallthru
      _
    %p191 = scmp.le.s32.totalorder 1, %s10
    %p192 = scmp.lt.s32.totalorder %s10, 7
    %p193 = pnand %p191, %p192
    %p194 = pneg %p193
    // Predicated region
    $region33: #{tpu_custom_call.1} parent=5 // pred_check
      _
    $region34: #{tpu_custom_call.1} parent=5 // pred_check_branch
      %196 = sbr.rel (%p193) target = $region36
    $region35: #{tpu_custom_call.1} parent=5 // pred_region
      %s197 = ssub.s32 %s10, 1
      %p198 = scmp.lt.s32.totalorder %s15, 5
      %s199 = scalar_select %p198, %s15, 5
      %s200 = smul.addr %s199, 22
      %s201 = smul.addr %s200, 4
      %s202 = scalar_lea.vmem %s0, %s201
      %p203 = pneg %p36
      %p204 = pneg %p33
      %p205 = scmp.lt.s32.totalorder %s15, 5
      %s206 = scalar_select %p205, %s15, 5
      %s207 = smul.addr %s206, 4
      %s208 = smul.addr %s207, 8
      %s209 = scalar_lea.vmem %s1, %s208
      %p210 = pneg %p62
      %p211 = pneg %p59
      %p212 = scmp.lt.s32.totalorder %s15, 5
      %s213 = scalar_select %p212, %s15, 5
      %s214 = smul.addr %s213, 11
      %s215 = smul.addr %s214, 4
      %s216 = scalar_lea.vmem %s2, %s215
      %p217 = pneg %p88
      %p218 = pneg %p85
      %p219 = scmp.lt.s32.totalorder %s15, 5
      %s220 = scalar_select %p219, %s15, 5
      %s221 = smul.addr %s220, 2
      %s222 = smul.addr %s221, 8
      %s223 = scalar_lea.vmem %s3, %s222
      %p224 = pneg %p114
      %p225 = pneg %p111
      %p226 = pneg %p140
      %p227 = pneg %p137
      %p228 = scmp.lt.s32.totalorder %s15, 5
      %s229 = scalar_select %p228, %s15, 5
      %s230 = scalar_lea.vmem %s4, %s229
      %p231 = scmp.lt.s32.totalorder %s15, 5
      %s232 = scalar_select %p231, %s15, 5
      %s233 = smul.addr %s232, 22
      %s234 = smul.addr %s233, 4
      %s235 = scalar_lea.vmem %s0, %s234
      %p236 = scmp.lt.s32.totalorder %s15, 5
      %s237 = scalar_select %p236, %s15, 5
      %s238 = smul.addr %s237, 4
      %s239 = smul.addr %s238, 8
      %s240 = scalar_lea.vmem %s1, %s239
      %p241 = scmp.lt.s32.totalorder %s15, 5
      %s242 = scalar_select %p241, %s15, 5
      %s243 = smul.addr %s242, 11
      %s244 = smul.addr %s243, 4
      %s245 = scalar_lea.vmem %s2, %s244
      %p246 = scmp.lt.s32.totalorder %s15, 5
      %s247 = scalar_select %p246, %s15, 5
      %s248 = smul.addr %s247, 2
      %s249 = smul.addr %s248, 8
      %s250 = scalar_lea.vmem %s3, %s249
      %p251 = scmp.lt.s32.totalorder %s15, 5
      %s252 = scalar_select %p251, %s15, 5
      %s253 = scalar_lea.vmem %s4, %s252
      %v255 = vld [vmem:[%s235] sm:$0xf]
      %v256 = vld [vmem:[%s235 + $0x4] sm:$0xf]
      %v257 = vld [vmem:[%s235 + $0x8] sm:$0xf]
      %v258 = vld [vmem:[%s235 + $0xc] sm:$0xf]
      %v259 = vld [vmem:[%s235 + $0x10] sm:$0xf]
      %v260 = vld [vmem:[%s235 + $0x14] sm:$0xf]
      %v261 = vld [vmem:[%s235 + $0x18] sm:$0xf]
      %v262 = vld [vmem:[%s235 + $0x1c] sm:$0xf]
      %v263 = vld [vmem:[%s235 + $0x20] sm:$0xf]
      %v264 = vld [vmem:[%s235 + $0x24] sm:$0xf]
      %v265 = vld [vmem:[%s235 + $0x28] sm:$0xf]
      %v266 = vld [vmem:[%s235 + $0x2c] sm:$0xf]
      %v267 = vld [vmem:[%s235 + $0x30] sm:$0xf]
      %v268 = vld [vmem:[%s235 + $0x34] sm:$0xf]
      %v269 = vld [vmem:[%s235 + $0x38] sm:$0xf]
      %v270 = vld [vmem:[%s235 + $0x3c] sm:$0xf]
      %v271 = vld [vmem:[%s235 + $0x40] sm:$0xf]
      %v272 = vld [vmem:[%s235 + $0x44] sm:$0xf]
      %v273 = vld [vmem:[%s235 + $0x48] sm:$0xf]
      %v274 = vld [vmem:[%s235 + $0x4c] sm:$0xf]
      %v275 = vld [vmem:[%s235 + $0x50] sm:$0xf]
      %v276 = vld [vmem:[%s235 + $0x54] sm:$0xf]
      %v277 = vld [vmem:[%s245] sm:$0xf]
      %v278 = vld [vmem:[%s245 + $0x4] sm:$0xf]
      %v279 = vld [vmem:[%s245 + $0x8] sm:$0xf]
      %v280 = vld [vmem:[%s245 + $0xc] sm:$0xf]
      %v281 = vld [vmem:[%s245 + $0x10] sm:$0xf]
      %v282 = vld [vmem:[%s245 + $0x14] sm:$0xf]
      %v283 = vld [vmem:[%s245 + $0x18] sm:$0xf]
      %v284 = vld [vmem:[%s245 + $0x1c] sm:$0xf]
      %v285 = vld [vmem:[%s245 + $0x20] sm:$0xf]
      %v286 = vld [vmem:[%s245 + $0x24] sm:$0xf]
      %v287 = vld [vmem:[%s245 + $0x28] sm:$0xf]
      %v310 = vunpack.c.l.b16 %v255
      %v311 = vunpack.c.l.b16 %v256
      %v312 = vunpack.c.l.b16 %v257
      %v313 = vunpack.c.l.b16 %v258
      %v314 = vunpack.c.l.b16 %v259
      %v315 = vunpack.c.l.b16 %v260
      %v316 = vunpack.c.l.b16 %v261
      %v317 = vunpack.c.l.b16 %v262
      %v318 = vunpack.c.l.b16 %v263
      %v319 = vunpack.c.l.b16 %v264
      %v320 = vunpack.c.l.b16 %v265
      %v321 = vunpack.c.l.b16 %v266
      %v322 = vunpack.c.l.b16 %v267
      %v323 = vunpack.c.l.b16 %v268
      %v324 = vunpack.c.l.b16 %v269
      %v325 = vunpack.c.l.b16 %v270
      %v326 = vunpack.c.l.b16 %v271
      %v327 = vunpack.c.l.b16 %v272
      %v328 = vunpack.c.l.b16 %v273
      %v329 = vunpack.c.l.b16 %v274
      %v330 = vunpack.c.l.b16 %v275
      %v331 = vunpack.c.l.b16 %v276
      %v332 = vpack.c.b16 %v311, %v310
      %v333 = vpack.c.b16 %v313, %v312
      %v334 = vpack.c.b16 %v315, %v314
      %v335 = vpack.c.b16 %v317, %v316
      %v336 = vpack.c.b16 %v319, %v318
      %v337 = vpack.c.b16 %v321, %v320
      %v338 = vpack.c.b16 %v323, %v322
      %v339 = vpack.c.b16 %v325, %v324
      %v340 = vpack.c.b16 %v327, %v326
      %v341 = vpack.c.b16 %v329, %v328
      %v342 = vpack.c.b16 %v331, %v330
      %v354 = vunpack.c.l.b16 %v277
      %v355 = vunpack.c.l.b16 %v278
      %v356 = vunpack.c.l.b16 %v279
      %v357 = vunpack.c.l.b16 %v280
      %v358 = vunpack.c.l.b16 %v281
      %v359 = vunpack.c.l.b16 %v282
      %v360 = vunpack.c.l.b16 %v283
      %v361 = vunpack.c.l.b16 %v284
      %v362 = vunpack.c.l.b16 %v285
      %v363 = vunpack.c.l.b16 %v286
      %v364 = vunpack.c.l.b16 %v287
      %v365 = vpack.c.b16 %v355, %v354
      %v366 = vpack.c.b16 %v357, %v356
      %v367 = vpack.c.b16 %v359, %v358
      %v368 = vpack.c.b16 %v361, %v360
      %v369 = vpack.c.b16 %v363, %v362
      %v370 = vpack.c.b16 %v364, %v364
      %vm376 = vcmask 719872
      %v378 = vsel %vm376, %v332, 0
      %v381 = vsel %vm376, %v333, 0
      %v384 = vsel %vm376, %v334, 0
      %v387 = vsel %vm376, %v335, 0
      %v390 = vsel %vm376, %v336, 0
      %v393 = vsel %vm376, %v337, 0
      %v396 = vsel %vm376, %v338, 0
      %v399 = vsel %vm376, %v339, 0
      %v402 = vsel %vm376, %v340, 0
      %v405 = vsel %vm376, %v341, 0
      %v408 = vsel %vm376, %v342, 0
      %vm410 = vcmask 1043456
      %v412 = vsel %vm410, %v370, 0
      %414 = vmatprep.subr.bf16.mxu0 0
      %415 = vmatpush1.bf16.msra.mxu0 0
      %416 = vmatprep.subr.bf16.mxu0 0
      %417 = vmatpush1.bf16.msra.mxu0 0
      %418 = vmatprep.subr.bf16.mxu0 0
      %419 = vmatpush1.bf16.msra.mxu0 %v412
      %420 = vmatprep.subr.bf16.mxu0 0
      %421 = vmatpush1.bf16.msra.mxu0 %v369
      %422 = vmatprep.subr.bf16.mxu0 0
      %423 = vmatpush1.bf16.msra.mxu0 %v368
      %424 = vmatprep.subr.bf16.mxu0 0
      %425 = vmatpush1.bf16.msra.mxu0 %v367
      %426 = vmatprep.subr.bf16.mxu0 0
      %427 = vmatpush1.bf16.msra.mxu0 %v366
      %428 = vmatprep.subr.bf16.mxu0 0
      %429 = vmatpush1.bf16.msra.mxu0 %v365
      %430 = vmatprep.subr.bf16.mxu0 0
      %431 = vmatpush2.bf16.msra.mxu0 0
      %432 = vmatprep.subr.bf16.mxu0 0
      %433 = vmatpush2.bf16.msra.mxu0 0
      %434 = vmatprep.subr.bf16.mxu0 0
      %435 = vmatpush2.bf16.msra.mxu0 0
      %436 = vmatprep.subr.bf16.mxu0 0
      %437 = vmatpush2.bf16.msra.mxu0 0
      %438 = vmatprep.subr.bf16.mxu0 0
      %439 = vmatpush2.bf16.msra.mxu0 0
      %440 = vmatprep.subr.bf16.mxu0 0
      %441 = vmatpush2.bf16.msra.mxu0 0
      %442 = vmatprep.subr.bf16.mxu0 0
      %443 = vmatpush2.bf16.msra.mxu0 0
      %444 = vmatprep.subr.bf16.mxu0 0
      %445 = vmatpush2.bf16.msra.mxu0 0
      %446 = vmatprep.mubr.bf16.mxu0 0
      %447 = vmatmul.mubr.bf16.gmra.mxu0 %v378
      %v448 = vpop.f32.mrf.mxu0
      %v449 = vadd.f32 0.0, %v448
      %v450 = vpop.f32.mrf.mxu0
      %v451 = vpop.f32.mrf.mxu0
      %v452 = vadd.f32 0.0, %v451
      %v453 = vpop.f32.mrf.mxu0
      %454 = vmatprep.mubr.bf16.mxu0 0
      %455 = vmatmul.mubr.bf16.gmra.mxu0 %v381
      %v456 = vpop.f32.mrf.mxu0
      %v457 = vadd.f32 0.0, %v456
      %v458 = vpop.f32.mrf.mxu0
      %v459 = vpop.f32.mrf.mxu0
      %v460 = vadd.f32 0.0, %v459
      %v461 = vpop.f32.mrf.mxu0
      %462 = vmatprep.mubr.bf16.mxu0 0
      %463 = vmatmul.mubr.bf16.gmra.mxu0 %v384
      %v464 = vpop.f32.mrf.mxu0
      %v465 = vadd.f32 0.0, %v464
      %v466 = vpop.f32.mrf.mxu0
      %v467 = vpop.f32.mrf.mxu0
      %v468 = vadd.f32 0.0, %v467
      %v469 = vpop.f32.mrf.mxu0
      %470 = vmatprep.mubr.bf16.mxu0 0
      %471 = vmatmul.mubr.bf16.gmra.mxu0 %v387
      %v472 = vpop.f32.mrf.mxu0
      %v473 = vadd.f32 0.0, %v472
      %v474 = vpop.f32.mrf.mxu0
      %v475 = vpop.f32.mrf.mxu0
      %v476 = vadd.f32 0.0, %v475
      %v477 = vpop.f32.mrf.mxu0
      %478 = vmatprep.mubr.bf16.mxu0 0
      %479 = vmatmul.mubr.bf16.gmra.mxu0 %v390
      %v480 = vpop.f32.mrf.mxu0
      %v481 = vadd.f32 0.0, %v480
      %v482 = vpop.f32.mrf.mxu0
      %v483 = vpop.f32.mrf.mxu0
      %v484 = vadd.f32 0.0, %v483
      %v485 = vpop.f32.mrf.mxu0
      %486 = vmatprep.mubr.bf16.mxu0 0
      %487 = vmatmul.mubr.bf16.gmra.mxu0 %v393
      %v488 = vpop.f32.mrf.mxu0
      %v489 = vadd.f32 0.0, %v488
      %v490 = vpop.f32.mrf.mxu0
      %v491 = vpop.f32.mrf.mxu0
      %v492 = vadd.f32 0.0, %v491
      %v493 = vpop.f32.mrf.mxu0
      %494 = vmatprep.mubr.bf16.mxu0 0
      %495 = vmatmul.mubr.bf16.gmra.mxu0 %v396
      %v496 = vpop.f32.mrf.mxu0
      %v497 = vadd.f32 0.0, %v496
      %v498 = vpop.f32.mrf.mxu0
      %v499 = vpop.f32.mrf.mxu0
      %v500 = vadd.f32 0.0, %v499
      %v501 = vpop.f32.mrf.mxu0
      %502 = vmatprep.mubr.bf16.mxu0 0
      %503 = vmatmul.mubr.bf16.gmra.mxu0 %v399
      %v504 = vpop.f32.mrf.mxu0
      %v505 = vadd.f32 0.0, %v504
      %v506 = vpop.f32.mrf.mxu0
      %v507 = vpop.f32.mrf.mxu0
      %v508 = vadd.f32 0.0, %v507
      %v509 = vpop.f32.mrf.mxu0
      %510 = vmatprep.mubr.bf16.mxu0 0
      %511 = vmatmul.mubr.bf16.gmra.mxu0 %v402
      %v512 = vpop.f32.mrf.mxu0
      %v513 = vadd.f32 0.0, %v512
      %v514 = vpop.f32.mrf.mxu0
      %v515 = vpop.f32.mrf.mxu0
      %v516 = vadd.f32 0.0, %v515
      %v517 = vpop.f32.mrf.mxu0
      %518 = vmatprep.mubr.bf16.mxu0 0
      %519 = vmatmul.mubr.bf16.gmra.mxu0 %v405
      %v520 = vpop.f32.mrf.mxu0
      %v521 = vadd.f32 0.0, %v520
      %v522 = vpop.f32.mrf.mxu0
      %v523 = vpop.f32.mrf.mxu0
      %v524 = vadd.f32 0.0, %v523
      %v525 = vpop.f32.mrf.mxu0
      %526 = vmatprep.mubr.bf16.mxu0 0
      %527 = vmatmul.mubr.bf16.gmra.mxu0 %v408
      %v528 = vpop.f32.mrf.mxu0
      %v529 = vadd.f32 0.0, %v528
      %v530 = vpop.f32.mrf.mxu0
      %v531 = vpop.f32.mrf.mxu0
      %v532 = vadd.f32 0.0, %v531
      %v533 = vpop.f32.mrf.mxu0
      %534 = vdwg.mxu0
      %v535 = vld [vmem:[%s240] sm:$0xff]
      %v536 = vld [vmem:[%s240 + $0x8] sm:$0xff]
      %v537 = vld [vmem:[%s240 + $0x10] sm:$0xf]
      %v538 = vld [vmem:[%s240 + $0x18] sm:$0xf]
      %vm539 = vcmask 392192
      %v541 = vsel %vm539, %v536, 0
      %v544 = vsel %vm539, %v538, 0
      %546 = vmatprep.subr.mxu0 0.0
      %547 = vmatpush1.msra.mxu0 %v508
      %548 = vmatprep.subr.mxu0 0.0
      %549 = vmatpush1.msra.mxu0 %v505
      %550 = vmatprep.subr.mxu0 0.0
      %551 = vmatpush1.msra.mxu0 %v500
      %552 = vmatprep.subr.mxu0 0.0
      %553 = vmatpush1.msra.mxu0 %v497
      %554 = vmatprep.subr.mxu0 0.0
      %555 = vmatpush1.msra.mxu0 %v492
      %556 = vmatprep.subr.mxu0 0.0
      %557 = vmatpush1.msra.mxu0 %v489
      %558 = vmatprep.subr.mxu0 0.0
      %559 = vmatpush1.msra.mxu0 %v484
      %560 = vmatprep.subr.mxu0 0.0
      %561 = vmatpush1.msra.mxu0 %v481
      %562 = vmatprep.subr.mxu0 0.0
      %563 = vmatpush1.msra.mxu0 %v476
      %564 = vmatprep.subr.mxu0 0.0
      %565 = vmatpush1.msra.mxu0 %v473
      %566 = vmatprep.subr.mxu0 0.0
      %567 = vmatpush1.msra.mxu0 %v468
      %568 = vmatprep.subr.mxu0 0.0
      %569 = vmatpush1.msra.mxu0 %v465
      %570 = vmatprep.subr.mxu0 0.0
      %571 = vmatpush1.msra.mxu0 %v460
      %572 = vmatprep.subr.mxu0 0.0
      %573 = vmatpush1.msra.mxu0 %v457
      %574 = vmatprep.subr.mxu0 0.0
      %575 = vmatpush1.msra.mxu0 %v452
      %576 = vmatprep.subr.mxu0 0.0
      %577 = vmatpush1.msra.mxu0 %v449
      %578 = vmatprep.subr.mxu0 0.0
      %579 = vmatpush2.msra.mxu0 0.0
      %580 = vmatprep.subr.mxu0 0.0
      %581 = vmatpush2.msra.mxu0 0.0
      %582 = vmatprep.subr.mxu0 0.0
      %583 = vmatpush2.msra.mxu0 0.0
      %584 = vmatprep.subr.mxu0 0.0
      %585 = vmatpush2.msra.mxu0 0.0
      %586 = vmatprep.subr.mxu0 0.0
      %587 = vmatpush2.msra.mxu0 0.0
      %588 = vmatprep.subr.mxu0 0.0
      %589 = vmatpush2.msra.mxu0 0.0
      %590 = vmatprep.subr.mxu0 0.0
      %591 = vmatpush2.msra.mxu0 0.0
      %592 = vmatprep.subr.mxu0 0.0
      %593 = vmatpush2.msra.mxu0 0.0
      %594 = vmatprep.subr.mxu0 0.0
      %595 = vmatpush2.msra.mxu0 0.0
      %596 = vmatprep.subr.mxu0 0.0
      %597 = vmatpush2.msra.mxu0 0.0
      %598 = vmatprep.subr.mxu0 0.0
      %599 = vmatpush2.msra.mxu0 %v532
      %600 = vmatprep.subr.mxu0 0.0
      %601 = vmatpush2.msra.mxu0 %v529
      %602 = vmatprep.subr.mxu0 0.0
      %603 = vmatpush2.msra.mxu0 %v524
      %604 = vmatprep.subr.mxu0 0.0
      %605 = vmatpush2.msra.mxu0 %v521
      %606 = vmatprep.subr.mxu0 0.0
      %607 = vmatpush2.msra.mxu0 %v516
      %608 = vmatprep.subr.mxu0 0.0
      %609 = vmatpush2.msra.mxu0 %v513
      %610 = vmatprep.mubr.f32.mxu0 %v541
      %611 = vmatmul.mubr.f32.gmra.mxu0 %v535
      %v612 = vpop.f32.mrf.mxu0
      %v613 = vadd.f32 0.0, %v612
      %v614 = vpop.f32.mrf.mxu0
      %615 = vmatprep.mubr.f32.mxu0 %v544
      %616 = vmatmul.mubr.f32.gmra.mxu0 %v537
      %v617 = vpop.f32.mrf.mxu0
      %v618 = vadd.f32 0.0, %v617
      %v619 = vpop.f32.mrf.mxu0
      %620 = vdwg.mxu0
      %v621 = vld [vmem:[%s250] sm:$0xff]
      %v622 = vld [vmem:[%s250 + $0x8] sm:$0xf]
      %v623 = vsub.f32 %v613, %v621
      %v624 = vsub.f32 %v618, %v622
      %v625 = vand.u32 2147483647, %v623
      %v626 = vand.u32 2147483647, %v624
      %vm627 = vcmask 48128
      %v628 = vsel %vm627, %v625, 0.0
      %vm629 = vcmask 44032
      %v630 = vsel %vm629, %v626, 0.0
      %v631 = vadd.f32 %v628, %v630
      %632 = vadd.xlane.f32.xlu0 %v631
      %v633 = vpop.xlane.xlu0 %632
      %v634 = vrot.slane %v633, 4
      %v635 = vadd.f32 %v633, %v634
      %v636 = vrot.slane %v635, 2
      %v637 = vadd.f32 %v635, %v636
      %v638 = vrot.slane %v637, 1
      %v639 = vadd.f32 %v637, %v638
      %s640 = vtos %v639
      %v641 = vstv %s640
      %vm642 = vcmask 0
      %643 = vst.msk [vmem:[%s253] sm:$0x1] %vm642, %v641
      %p644 = scmp.lt.s32.totalorder %s15, 5
      %s645 = scalar_select %p644, %s15, 5
      %s646 = scalar_lea.vmem %s4, %s645
      // Predicated region
      $region37: #{tpu_custom_call.1} parent=35 // pred_check
        %p647 = pneg %p137
      $region38: #{tpu_custom_call.1} parent=35 // pred_check_branch
        %649 = sbr.rel (%p647) target = $region40
      $region39: #{tpu_custom_call.1} parent=35 // pred_region
        _
      $region40: #{tpu_custom_call.1} parent=35 // pred_fallthru
        _
    $region36: #{tpu_custom_call.1} parent=5 // pred_fallthru
      _
    %p650 = scmp.le.s32.totalorder 2, %s10
    // Predicated region
    $region41: #{tpu_custom_call.1} parent=5 // pred_check
      %p651 = pneg %p650
    $region42: #{tpu_custom_call.1} parent=5 // pred_check_branch
      %653 = sbr.rel (%p651) target = $region44
    $region43: #{tpu_custom_call.1} parent=5 // pred_region
      %s654 = ssub.s32 %s10, 2
      // Predicated region
      $region45: #{tpu_custom_call.1} parent=43 // pred_check
        %p655 = pneg %p143
      $region46: #{tpu_custom_call.1} parent=43 // pred_check_branch
        %657 = sbr.rel (%p655) target = $region48
      $region47: #{tpu_custom_call.1} parent=43 // pred_region
        %p658 = scmp.lt.s32.totalorder %s16, 5
        %s659 = scalar_select %p658, %s16, 5
        %s660 = scalar_lea.vmem %s4, %s659
      $region48: #{tpu_custom_call.1} parent=43 // pred_fallthru
        _
    $region44: #{tpu_custom_call.1} parent=5 // pred_fallthru
      _
  $region6: #{tpu_custom_call.1} parent=0 // loop_footer
    %s14 = sadd.s32 1, %s10
  $region7: #{tpu_custom_call.1} parent=0 // loop_footer_branch
    %9 = sbr.rel target = $region3
  $region8: #{tpu_custom_call.1} parent=0 // loop_exit
    _

</llo_original>
